<compile_context>
chip_gen: v5e
topology: v5e:2x2
jax: 0.10.0
libtpu: 0.0.40
codegen_flags: <defaults>
</compile_context>

<pallas_src>
import functools

import jax
import jax.numpy as jnp
from jax.experimental import pallas as pl
from jax.experimental.pallas import tpu as pltpu

LANE = 128
SUBLANE = 8


def _round_up(n, m):
    return ((n + m - 1) // m) * m


def _pad2(a, shape):
    """Zero-pad a 2-D array up to `shape` (no-op if already that shape)."""
    pr = shape[0] - a.shape[0]
    pc = shape[1] - a.shape[1]
    if pr == 0 and pc == 0:
        return a
    return jnp.pad(a, ((0, pr), (0, pc)))


def dqn_kernel(x_ref, w1_ref, b1_ref, w2_ref, b2_ref, w3_ref, b3_ref, o_ref):
    # Cast the streamed x tile to the MXU compute dtype inside the kernel
    # (avoids a separate XLA cast pass over x in HBM when compute_dtype=bf16).
    x = x_ref[...].astype(w1_ref.dtype)
    # fc1 + ReLU  (MXU matmul, f32 accumulate; bias/ReLU on VPU in f32)
    h1 = jnp.dot(x, w1_ref[...], preferred_element_type=jnp.float32)
    h1 = jnp.maximum(h1 + b1_ref[...], 0.0)
    # fc2 + ReLU
    h2 = jnp.dot(h1.astype(w2_ref.dtype), w2_ref[...],
                 preferred_element_type=jnp.float32)
    h2 = jnp.maximum(h2 + b2_ref[...], 0.0)
    # out (no activation); lane-dense store (out width padded to 128 multiple)
    o = jnp.dot(h2.astype(w3_ref.dtype), w3_ref[...],
                preferred_element_type=jnp.float32)
    o_ref[...] = (o + b3_ref[...]).astype(o_ref.dtype)


@functools.partial(jax.jit, static_argnames=("block_b", "compute_dtype"))
def dqn_forward(x, params, *, block_b=512, compute_dtype=jnp.float32):
    """x: [B, input_dim] float32; params: dict of (w1,b1,w2,b2,w3,b3).

    compute_dtype: dtype fed to the MXU for x / weights (f32 or bf16).
    Accumulation, bias adds and ReLU always happen in f32.
    """
    w1, b1 = params["w1"], params["b1"]
    w2, b2 = params["w2"], params["b2"]
    w3, b3 = params["w3"], params["b3"]

    B, in_dim = x.shape
    h1_dim, h2_dim, out_dim = w1.shape[1], w2.shape[1], w3.shape[1]

    # Pad hidden / output widths to full 128-lane vregs (zero padding is exact:
    # padded hidden columns stay 0 through bias=0 and ReLU, and padded weight
    # rows/columns contribute nothing).
    h1p = _round_up(h1_dim, LANE)
    h2p = _round_up(h2_dim, LANE)
    outp = _round_up(out_dim, LANE)

    w1p = _pad2(w1, (in_dim, h1p)).astype(compute_dtype)
    b1p = _pad2(b1, (1, h1p)).astype(jnp.float32)
    w2p = _pad2(w2, (h1p, h2p)).astype(compute_dtype)
    b2p = _pad2(b2, (1, h2p)).astype(jnp.float32)
    w3p = _pad2(w3, (h2p, outp)).astype(compute_dtype)
    b3p = _pad2(b3, (1, outp)).astype(jnp.float32)

    # Batch tiling: stream x in tiles of `tb` rows; weights stay resident.
    # At these widths (<=128 padded lanes) even tb=512 uses <1 MiB of VMEM
    # per double-buffered tile, far below the scoped-VMEM limit.
    tb = min(block_b, _round_up(B, SUBLANE))
    n_tiles = pl.cdiv(B, tb)
    pB = n_tiles * tb
    xp = _pad2(x, (pB, in_dim))   # rows only; padded rows are sliced off below

    out = pl.pallas_call(
        dqn_kernel,
        out_shape=jax.ShapeDtypeStruct((pB, outp), jnp.float32),
        grid_spec=pltpu.PrefetchScalarGridSpec(
            num_scalar_prefetch=0,
            grid=(n_tiles,),
            in_specs=[
                pl.BlockSpec((tb, in_dim), lambda i: (i, 0)),   # x tile streams
                pl.BlockSpec((in_dim, h1p), lambda i: (0, 0)),  # weights resident
                pl.BlockSpec((1, h1p), lambda i: (0, 0)),
                pl.BlockSpec((h1p, h2p), lambda i: (0, 0)),
                pl.BlockSpec((1, h2p), lambda i: (0, 0)),
                pl.BlockSpec((h2p, outp), lambda i: (0, 0)),
                pl.BlockSpec((1, outp), lambda i: (0, 0)),
            ],
            out_specs=pl.BlockSpec((tb, outp), lambda i: (i, 0)),
        ),
        compiler_params=pltpu.CompilerParams(
            dimension_semantics=("parallel",)),  # batch tiles shard across TCs
    )(xp, w1p, b1p, w2p, b2p, w3p, b3p)

    return out[:B, :out_dim]


def init_dqn_params(key, input_dim, output_dim, layers):
    """Deterministic init mimicking torch.nn.Linear default (U(+-1/sqrt(fan_in))).
    Weights stored as [in_features, out_features] (transposed vs torch)."""
    dims = [(input_dim, layers[0]), (layers[0], layers[1]), (layers[1], output_dim)]
    params = {}
    keys = jax.random.split(key, 2 * len(dims))
    for i, (fan_in, fan_out) in enumerate(dims):
        bound = 1.0 / jnp.sqrt(jnp.float32(fan_in))
        w = jax.random.uniform(keys[2 * i], (fan_in, fan_out),
                               minval=-bound, maxval=bound, dtype=jnp.float32)
        b = jax.random.uniform(keys[2 * i + 1], (1, fan_out),
                               minval=-bound, maxval=bound, dtype=jnp.float32)
        params[f"w{i + 1}"] = w
        params[f"b{i + 1}"] = b
    return params


def dqn_reference(x, params):
    """Pure-JAX reference for correctness checking."""
    h = jnp.maximum(x @ params["w1"] + params["b1"], 0.0)
    h = jnp.maximum(h @ params["w2"] + params["b2"], 0.0)
    return h @ params["w3"] + params["b3"]


if __name__ == "__main__":
    # Shapes consistent with the module's forward:
    # state vector of size 32, hidden layers (64, 64), 4 actions.
    input_dim, output_dim = 32, 4
    layers = (64, 64)

    key = jax.random.PRNGKey(0)
    k_x1, k_x2, k_p = jax.random.split(key, 3)
    params = init_dqn_params(k_p, input_dim, output_dim, layers)

    # 1) tiny online-acting batch (single grid step)
    x_small = jax.random.normal(k_x1, (8, input_dim), dtype=jnp.float32)
    y_small = dqn_forward(x_small, params)
    jax.block_until_ready(y_small)
    assert y_small.shape == (8, output_dim)
    assert jnp.allclose(y_small, dqn_reference(x_small, params),
                        atol=1e-5, rtol=1e-5), "small-batch mismatch vs reference"

    # 2) replay-buffer-sized batch exercising the batch grid (multiple tiles,
    #    ragged last tile handled by zero padding + slice).
    x_big = jax.random.normal(k_x2, (600, input_dim), dtype=jnp.float32)
    y_big = dqn_forward(x_big, params, block_b=256)
    jax.block_until_ready(y_big)
    assert y_big.shape == (600, output_dim)
    assert jnp.allclose(y_big, dqn_reference(x_big, params),
                        atol=1e-5, rtol=1e-5), "big-batch mismatch vs reference"

    # 3) bf16 compute path (v6e/v7x MXU fast path; in-kernel cast of x,
    #    f32 accumulate + epilogue).
    y_bf16 = dqn_forward(x_big, params, block_b=256, compute_dtype=jnp.bfloat16)
    jax.block_until_ready(y_bf16)
    assert y_bf16.shape == (600, output_dim)
    assert jnp.allclose(y_bf16, dqn_reference(x_big, params),
                        atol=1e-1, rtol=1e-1), "bf16 path diverged from reference"

    print("KERNEL_OK")
</pallas_src>

<mosaic_0001>
module attributes {stable_mosaic.version = 11 : i64} {
  func.func @dqn_kernel(%arg0: i32, %arg1: memref<8x32xf32, #tpu.memory_space<vmem>>, %arg2: memref<32x128xf32, #tpu.memory_space<vmem>>, %arg3: memref<1x128xf32, #tpu.memory_space<vmem>>, %arg4: memref<128x128xf32, #tpu.memory_space<vmem>>, %arg5: memref<1x128xf32, #tpu.memory_space<vmem>>, %arg6: memref<128x128xf32, #tpu.memory_space<vmem>>, %arg7: memref<1x128xf32, #tpu.memory_space<vmem>>, %arg8: memref<8x128xf32, #tpu.memory_space<vmem>>) attributes {dimension_semantics = [#tpu.dimension_semantics<parallel>], iteration_bounds = array<i64: 1>, scalar_prefetch = 0 : i64, scratch_operands = 0 : i64, tpu.core_type = #tpu.core_type<tc>, window_params = [{transform_indices = @transform_0, window_bounds = array<i64: 8, 32>}, {pipeline_mode = #tpu.pipeline_mode<synchronous>, transform_indices = @transform_1, window_bounds = array<i64: 32, 128>}, {pipeline_mode = #tpu.pipeline_mode<synchronous>, transform_indices = @transform_2, window_bounds = array<i64: 1, 128>}, {pipeline_mode = #tpu.pipeline_mode<synchronous>, transform_indices = @transform_3, window_bounds = array<i64: 128, 128>}, {pipeline_mode = #tpu.pipeline_mode<synchronous>, transform_indices = @transform_4, window_bounds = array<i64: 1, 128>}, {pipeline_mode = #tpu.pipeline_mode<synchronous>, transform_indices = @transform_5, window_bounds = array<i64: 128, 128>}, {pipeline_mode = #tpu.pipeline_mode<synchronous>, transform_indices = @transform_6, window_bounds = array<i64: 1, 128>}, {transform_indices = @transform_7, window_bounds = array<i64: 8, 128>}]} {
    %c0 = arith.constant 0 : index
    %c0_0 = arith.constant 0 : index
    %0 = vector.load %arg1[%c0, %c0_0] : memref<8x32xf32, #tpu.memory_space<vmem>>, vector<8x32xf32>
    %c0_1 = arith.constant 0 : index
    %c0_2 = arith.constant 0 : index
    %1 = vector.load %arg2[%c0_1, %c0_2] : memref<32x128xf32, #tpu.memory_space<vmem>>, vector<32x128xf32>
    %cst = arith.constant dense<0.000000e+00> : vector<8x128xf32>
    %2 = tpu.matmul %0, %1, %cst {dimension_numbers = #tpu.dot_dimension_numbers<[1], [0], [0], [1], [0, 0, 1, 1], [], []>} : vector<8x32xf32>, vector<32x128xf32>, vector<8x128xf32> -> vector<8x128xf32>
    %c0_3 = arith.constant 0 : index
    %c0_4 = arith.constant 0 : index
    %3 = vector.load %arg3[%c0_3, %c0_4] : memref<1x128xf32, #tpu.memory_space<vmem>>, vector<1x128xf32>
    %4 = vector.broadcast %3 : vector<1x128xf32> to vector<8x128xf32>
    %5 = arith.addf %2, %4 : vector<8x128xf32>
    %cst_5 = arith.constant 0.000000e+00 : f32
    %6 = vector.broadcast %cst_5 : f32 to vector<8x128xf32>
    %7 = arith.maximumf %5, %6 : vector<8x128xf32>
    %c0_6 = arith.constant 0 : index
    %c0_7 = arith.constant 0 : index
    %8 = vector.load %arg4[%c0_6, %c0_7] : memref<128x128xf32, #tpu.memory_space<vmem>>, vector<128x128xf32>
    %cst_8 = arith.constant dense<0.000000e+00> : vector<8x128xf32>
    %9 = tpu.matmul %7, %8, %cst_8 {dimension_numbers = #tpu.dot_dimension_numbers<[1], [0], [0], [1], [0, 0, 1, 1], [], []>} : vector<8x128xf32>, vector<128x128xf32>, vector<8x128xf32> -> vector<8x128xf32>
    %c0_9 = arith.constant 0 : index
    %c0_10 = arith.constant 0 : index
    %10 = vector.load %arg5[%c0_9, %c0_10] : memref<1x128xf32, #tpu.memory_space<vmem>>, vector<1x128xf32>
    %11 = vector.broadcast %10 : vector<1x128xf32> to vector<8x128xf32>
    %12 = arith.addf %9, %11 : vector<8x128xf32>
    %cst_11 = arith.constant 0.000000e+00 : f32
    %13 = vector.broadcast %cst_11 : f32 to vector<8x128xf32>
    %14 = arith.maximumf %12, %13 : vector<8x128xf32>
    %c0_12 = arith.constant 0 : index
    %c0_13 = arith.constant 0 : index
    %15 = vector.load %arg6[%c0_12, %c0_13] : memref<128x128xf32, #tpu.memory_space<vmem>>, vector<128x128xf32>
    %cst_14 = arith.constant dense<0.000000e+00> : vector<8x128xf32>
    %16 = tpu.matmul %14, %15, %cst_14 {dimension_numbers = #tpu.dot_dimension_numbers<[1], [0], [0], [1], [0, 0, 1, 1], [], []>} : vector<8x128xf32>, vector<128x128xf32>, vector<8x128xf32> -> vector<8x128xf32>
    %c0_15 = arith.constant 0 : index
    %c0_16 = arith.constant 0 : index
    %17 = vector.load %arg7[%c0_15, %c0_16] : memref<1x128xf32, #tpu.memory_space<vmem>>, vector<1x128xf32>
    %18 = vector.broadcast %17 : vector<1x128xf32> to vector<8x128xf32>
    %19 = arith.addf %16, %18 : vector<8x128xf32>
    %c0_17 = arith.constant 0 : index
    %c0_18 = arith.constant 0 : index
    %20 = vector.load %arg8[%c0_17, %c0_18] : memref<8x128xf32, #tpu.memory_space<vmem>>, vector<8x128xf32>
    tpu.vector_store %arg8[%c0_17, %c0_18], %19 {strides = array<i32>} : memref<8x128xf32, #tpu.memory_space<vmem>>, vector<8x128xf32>,
    return
  }
  func.func @transform_0(%arg0: i32) -> (i32, i32) {
    %c0_i32 = arith.constant 0 : i32
    %c0_i32_0 = arith.constant 0 : i32
    return %arg0, %c0_i32 : i32, i32
  }
  func.func @transform_1(%arg0: i32) -> (i32, i32) {
    %c0_i32 = arith.constant 0 : i32
    %c0_i32_0 = arith.constant 0 : i32
    %c0_i32_1 = arith.constant 0 : i32
    return %c0_i32, %c0_i32_0 : i32, i32
  }
  func.func @transform_2(%arg0: i32) -> (i32, i32) {
    %c0_i32 = arith.constant 0 : i32
    %c0_i32_0 = arith.constant 0 : i32
    %c0_i32_1 = arith.constant 0 : i32
    return %c0_i32, %c0_i32_0 : i32, i32
  }
  func.func @transform_3(%arg0: i32) -> (i32, i32) {
    %c0_i32 = arith.constant 0 : i32
    %c0_i32_0 = arith.constant 0 : i32
    %c0_i32_1 = arith.constant 0 : i32
    return %c0_i32, %c0_i32_0 : i32, i32
  }
  func.func @transform_4(%arg0: i32) -> (i32, i32) {
    %c0_i32 = arith.constant 0 : i32
    %c0_i32_0 = arith.constant 0 : i32
    %c0_i32_1 = arith.constant 0 : i32
    return %c0_i32, %c0_i32_0 : i32, i32
  }
  func.func @transform_5(%arg0: i32) -> (i32, i32) {
    %c0_i32 = arith.constant 0 : i32
    %c0_i32_0 = arith.constant 0 : i32
    %c0_i32_1 = arith.constant 0 : i32
    return %c0_i32, %c0_i32_0 : i32, i32
  }
  func.func @transform_6(%arg0: i32) -> (i32, i32) {
    %c0_i32 = arith.constant 0 : i32
    %c0_i32_0 = arith.constant 0 : i32
    %c0_i32_1 = arith.constant 0 : i32
    return %c0_i32, %c0_i32_0 : i32, i32
  }
  func.func @transform_7(%arg0: i32) -> (i32, i32) {
    %c0_i32 = arith.constant 0 : i32
    %c0_i32_0 = arith.constant 0 : i32
    return %arg0, %c0_i32 : i32, i32
  }
}

</mosaic_0001>

<llo_original>
// kernel: dqn_forward.1
$region0: #{dqn_forward.1}
  #allocation0 [shape = 'u32[]', space=smem, size = 0x4, offset = 0x4, fixed_abs, tag = 'smem constant byte address 0x4 - core index']
  #allocation1 [shape = 'u32[72,128]{1,0:T(1,128)}', space=vmem, size = 0x9000, scoped, tag = 'internal scratch']
  %s0 = inlined_call_operand.vmem [shape: f32[8,32], index: 0, kind: input, shape index: {}]
  %s1 = inlined_call_operand.vmem [shape: f32[32,128], index: 1, kind: input, shape index: {}]
  %s2 = inlined_call_operand.vmem [shape: f32[1,128], index: 2, kind: input, shape index: {}]
  %s3 = inlined_call_operand.vmem [shape: f32[128,128], index: 3, kind: input, shape index: {}]
  %s4 = inlined_call_operand.vmem [shape: f32[1,128], index: 4, kind: input, shape index: {}]
  %s5 = inlined_call_operand.vmem [shape: f32[128,128], index: 5, kind: input, shape index: {}]
  %s6 = inlined_call_operand.vmem [shape: f32[1,128], index: 6, kind: input, shape index: {}]
  %s7 = inlined_call_operand.vmem [shape: f32[8,128], index: 7, kind: output, shape index: {}]
  %s8 = sld [smem:[#allocation0]]
  $region38: #{dqn_forward.1} parent=0
    _
  %s10 = ssub.s32 1, %s8
  %s11 = scalar_select 0, %s10, %s8
  // Predicated region
  $region2: #{dqn_forward.1} parent=0 // pred_check
    _
  $region3: #{dqn_forward.1} parent=0 // pred_check_branch
    %13 = sbr.rel (0) target = $region5
  $region4: #{dqn_forward.1} parent=0 // pred_region
    _
  $region5: #{dqn_forward.1} parent=0 // pred_fallthru
    _
  // Predicated region
  $region6: #{dqn_forward.1} parent=0 // pred_check
    _
  $region7: #{dqn_forward.1} parent=0 // pred_check_branch
    %15 = sbr.rel (0) target = $region9
  $region8: #{dqn_forward.1} parent=0 // pred_region
    _
  $region9: #{dqn_forward.1} parent=0 // pred_fallthru
    _
  // Predicated region
  $region10: #{dqn_forward.1} parent=0 // pred_check
    _
  $region11: #{dqn_forward.1} parent=0 // pred_check_branch
    %17 = sbr.rel (0) target = $region13
  $region12: #{dqn_forward.1} parent=0 // pred_region
    _
  $region13: #{dqn_forward.1} parent=0 // pred_fallthru
    _
  // Predicated region
  $region14: #{dqn_forward.1} parent=0 // pred_check
    _
  $region15: #{dqn_forward.1} parent=0 // pred_check_branch
    %19 = sbr.rel (0) target = $region17
  $region16: #{dqn_forward.1} parent=0 // pred_region
    _
  $region17: #{dqn_forward.1} parent=0 // pred_fallthru
    _
  // Predicated region
  $region18: #{dqn_forward.1} parent=0 // pred_check
    _
  $region19: #{dqn_forward.1} parent=0 // pred_check_branch
    %21 = sbr.rel (0) target = $region21
  $region20: #{dqn_forward.1} parent=0 // pred_region
    _
  $region21: #{dqn_forward.1} parent=0 // pred_fallthru
    _
  // Predicated region
  $region22: #{dqn_forward.1} parent=0 // pred_check
    _
  $region23: #{dqn_forward.1} parent=0 // pred_check_branch
    %23 = sbr.rel (0) target = $region25
  $region24: #{dqn_forward.1} parent=0 // pred_region
    _
  $region25: #{dqn_forward.1} parent=0 // pred_fallthru
    _
  // Predicated region
  $region26: #{dqn_forward.1} parent=0 // pred_check
    _
  $region27: #{dqn_forward.1} parent=0 // pred_check_branch
    %25 = sbr.rel (0) target = $region29
  $region28: #{dqn_forward.1} parent=0 // pred_region
    _
  $region29: #{dqn_forward.1} parent=0 // pred_fallthru
    _
  %v26 = vld [vmem:[%s0] sm:$0xff]
  %v27 = vld [vmem:[%s1] sm:$0xff]
  %v28 = vld [vmem:[%s1 + $0x8] sm:$0xff]
  %v29 = vld [vmem:[%s1 + $0x10] sm:$0xff]
  %v30 = vld [vmem:[%s1 + $0x18] sm:$0xff]
  %v31 = vld [vmem:[%s2] sm:$0x1]
  %v33 = vperm.slane %v31, 0
  %vm35 = vcmask 261120
  %v37 = vsel %vm35, %v26, 0
  %39 = vmatpush.msra.mxu0 0.0
  %40 = vmatpush.msra.mxu0 0.0
  %41 = vmatpush.msra.mxu0 0.0
  %42 = vmatpush.msra.mxu0 0.0
  %43 = vmatpush.msra.mxu0 0.0
  %44 = vmatpush.msra.mxu0 0.0
  %45 = vmatpush.msra.mxu0 0.0
  %46 = vmatpush.msra.mxu0 0.0
  %47 = vmatpush.msra.mxu0 0.0
  %48 = vmatpush.msra.mxu0 0.0
  %49 = vmatpush.msra.mxu0 0.0
  %50 = vmatpush.msra.mxu0 0.0
  %51 = vmatpush.msra.mxu0 %v30
  %52 = vmatpush.msra.mxu0 %v29
  %53 = vmatpush.msra.mxu0 %v28
  %54 = vmatpush.msra.mxu0 %v27
  %55 = vmatmul.f32.gmra.mxu0 %v37
  %v56 = vpop.f32.mrf.mxu0
  %v57 = vadd.f32 %v33, %v56
  %58 = vdwg.mxu0
  %v59 = vmax.f32 %v57, 0.0
  %v60 = vld [vmem:[%s3] sm:$0xff]
  %v61 = vld [vmem:[%s3 + $0x8] sm:$0xff]
  %v62 = vld [vmem:[%s3 + $0x10] sm:$0xff]
  %v63 = vld [vmem:[%s3 + $0x18] sm:$0xff]
  %v64 = vld [vmem:[%s3 + $0x20] sm:$0xff]
  %v65 = vld [vmem:[%s3 + $0x28] sm:$0xff]
  %v66 = vld [vmem:[%s3 + $0x30] sm:$0xff]
  %v67 = vld [vmem:[%s3 + $0x38] sm:$0xff]
  %v68 = vld [vmem:[%s3 + $0x40] sm:$0xff]
  %v69 = vld [vmem:[%s3 + $0x48] sm:$0xff]
  %v70 = vld [vmem:[%s3 + $0x50] sm:$0xff]
  %v71 = vld [vmem:[%s3 + $0x58] sm:$0xff]
  %v72 = vld [vmem:[%s3 + $0x60] sm:$0xff]
  %v73 = vld [vmem:[%s3 + $0x68] sm:$0xff]
  %v74 = vld [vmem:[%s3 + $0x70] sm:$0xff]
  %v75 = vld [vmem:[%s3 + $0x78] sm:$0xff]
  %v76 = vld [vmem:[%s4] sm:$0x1]
  %v78 = vperm.slane %v76, 0
  %80 = vmatpush.msra.mxu0 %v75
  %81 = vmatpush.msra.mxu0 %v74
  %82 = vmatpush.msra.mxu0 %v73
  %83 = vmatpush.msra.mxu0 %v72
  %84 = vmatpush.msra.mxu0 %v71
  %85 = vmatpush.msra.mxu0 %v70
  %86 = vmatpush.msra.mxu0 %v69
  %87 = vmatpush.msra.mxu0 %v68
  %88 = vmatpush.msra.mxu0 %v67
  %89 = vmatpush.msra.mxu0 %v66
  %90 = vmatpush.msra.mxu0 %v65
  %91 = vmatpush.msra.mxu0 %v64
  %92 = vmatpush.msra.mxu0 %v63
  %93 = vmatpush.msra.mxu0 %v62
  %94 = vmatpush.msra.mxu0 %v61
  %95 = vmatpush.msra.mxu0 %v60
  %96 = vmatmul.f32.gmra.mxu0 %v59
  %v97 = vpop.f32.mrf.mxu0
  %v98 = vadd.f32 %v78, %v97
  %99 = vdwg.mxu0
  %v100 = vmax.f32 %v98, 0.0
  %v101 = vld [vmem:[%s5] sm:$0xff]
  %v102 = vld [vmem:[%s5 + $0x8] sm:$0xff]
  %v103 = vld [vmem:[%s5 + $0x10] sm:$0xff]
  %v104 = vld [vmem:[%s5 + $0x18] sm:$0xff]
  %v105 = vld [vmem:[%s5 + $0x20] sm:$0xff]
  %v106 = vld [vmem:[%s5 + $0x28] sm:$0xff]
  %v107 = vld [vmem:[%s5 + $0x30] sm:$0xff]
  %v108 = vld [vmem:[%s5 + $0x38] sm:$0xff]
  %v109 = vld [vmem:[%s5 + $0x40] sm:$0xff]
  %v110 = vld [vmem:[%s5 + $0x48] sm:$0xff]
  %v111 = vld [vmem:[%s5 + $0x50] sm:$0xff]
  %v112 = vld [vmem:[%s5 + $0x58] sm:$0xff]
  %v113 = vld [vmem:[%s5 + $0x60] sm:$0xff]
  %v114 = vld [vmem:[%s5 + $0x68] sm:$0xff]
  %v115 = vld [vmem:[%s5 + $0x70] sm:$0xff]
  %v116 = vld [vmem:[%s5 + $0x78] sm:$0xff]
  %v117 = vld [vmem:[%s6] sm:$0x1]
  %v119 = vperm.slane %v117, 0
  %121 = vmatpush.msra.mxu0 %v116
  %122 = vmatpush.msra.mxu0 %v115
  %123 = vmatpush.msra.mxu0 %v114
  %124 = vmatpush.msra.mxu0 %v113
  %125 = vmatpush.msra.mxu0 %v112
  %126 = vmatpush.msra.mxu0 %v111
  %127 = vmatpush.msra.mxu0 %v110
  %128 = vmatpush.msra.mxu0 %v109
  %129 = vmatpush.msra.mxu0 %v108
  %130 = vmatpush.msra.mxu0 %v107
  %131 = vmatpush.msra.mxu0 %v106
  %132 = vmatpush.msra.mxu0 %v105
  %133 = vmatpush.msra.mxu0 %v104
  %134 = vmatpush.msra.mxu0 %v103
  %135 = vmatpush.msra.mxu0 %v102
  %136 = vmatpush.msra.mxu0 %v101
  %137 = vmatmul.f32.gmra.mxu0 %v100
  %v138 = vpop.f32.mrf.mxu0
  %v139 = vadd.f32 %v119, %v138
  %140 = vdwg.mxu0
  %141 = vst [vmem:[%s7] sm:$0xff] %v139
  // Predicated region
  $region30: #{dqn_forward.1} parent=0 // pred_check
    _
  $region31: #{dqn_forward.1} parent=0 // pred_check_branch
    %143 = sbr.rel (0) target = $region33
  $region32: #{dqn_forward.1} parent=0 // pred_region
    _
  $region33: #{dqn_forward.1} parent=0 // pred_fallthru
    _
  // Predicated region
  $region34: #{dqn_forward.1} parent=0 // pred_check
    _
  $region35: #{dqn_forward.1} parent=0 // pred_check_branch
    %145 = sbr.rel (0) target = $region37
  $region36: #{dqn_forward.1} parent=0 // pred_region
    _
  $region37: #{dqn_forward.1} parent=0 // pred_fallthru
    _

</llo_original>
